<compile_context>
chip_gen: v5e
topology: v5e:2x2
jax: 0.10.0
libtpu: 0.0.40
codegen_flags: <defaults>
</compile_context>

<pallas_src>
import jax
import jax.numpy as jnp
from jax.experimental import pallas as pl
from jax.experimental.pallas import tpu as pltpu


def _round_up(x, m):
    return ((x + m - 1) // m) * m


def _default_tile_b():
    """Per-generation batch tile (rows). Multiple of 128 for lane-dense stores."""
    kind = ""
    try:
        kind = jax.devices()[0].device_kind.lower()
    except Exception:
        pass
    if ("v6" in kind) or ("v7" in kind):
        return 4096   # ~25.7 MB double-buffered f32 x; fits 32 MiB scoped / 64 MiB phys
    return 2048       # v5e & others: ~12.9 MB double-buffered (limit raised explicitly)


def linear_kernel(x_ref, w_ref, b_ref, o_ref):
    # x_ref: (TILE_B, D_in)   f32  -- streamed / double-buffered batch tile
    # w_ref: (D_in, DOUT_P)   bf16 -- resident (same block every grid step)
    # b_ref: (DOUT_P, 1)      f32  -- resident
    # o_ref: (DOUT_P, TILE_B) f32  -- transposed output: lane dim = batch (lane-dense)
    x = x_ref[...].astype(jnp.bfloat16)      # cast in-kernel; no extra HBM pass
    acc = jax.lax.dot_general(
        w_ref[...], x,
        dimension_numbers=(((0,), (1,)), ((), ())),     # -> (DOUT_P, TILE_B)
        preferred_element_type=jnp.float32)             # f32 accumulate on MXU
    o_ref[...] = acc + b_ref[...]


def _forward(x, w_p, b_p, output_dim, tile_b):
    input_dim, dout_p = w_p.shape
    x2d = x.reshape(-1, input_dim).astype(jnp.float32)   # == torch x.view(-1, 784)
    B = x2d.shape[0]

    if B <= tile_b:
        # Single step; block extents equal the full (possibly ragged) batch.
        tile = B
        grid = (1,)
    else:
        # tile_b is a multiple of 128 (lane-dense output stores) and of 8
        # (x sublane constraint). No jnp.pad: the partial last block is handled
        # by Pallas (OOB output lanes are clipped on writeback).
        tile = tile_b
        grid = (pl.cdiv(B, tile),)

    # Explicit scoped-VMEM budget for the double-buffered f32-x path.
    vmem_bytes = (2 * tile * input_dim * 4            # x, double-buffered, f32
                  + 2 * dout_p * tile * 4             # out, double-buffered, f32
                  + 2 * (input_dim * dout_p * 2       # W (bf16)
                         + dout_p * 4))               # bias (f32)
    vmem_limit = int(vmem_bytes * 1.25) + (4 << 20)

    out_t = pl.pallas_call(
        linear_kernel,
        out_shape=jax.ShapeDtypeStruct((dout_p, B), jnp.float32),
        grid_spec=pltpu.PrefetchScalarGridSpec(
            num_scalar_prefetch=0,
            grid=grid,
            in_specs=[
                # x tile marches down the batch; pipelined / double-buffered.
                pl.BlockSpec((tile, input_dim), lambda i: (i, 0)),
                # Weights + bias: same block every step -> resident in VMEM.
                # TODO(synk): pipeline_mode=pl.Buffered(1) would drop the
                # pointless second buffer (~50 KB); left default for safety.
                pl.BlockSpec((input_dim, dout_p), lambda i: (0, 0)),
                pl.BlockSpec((dout_p, 1), lambda i: (0, 0)),
            ],
            out_specs=pl.BlockSpec((dout_p, tile), lambda i: (0, i)),
        ),
        compiler_params=pltpu.CompilerParams(
            # Batch tiles are independent -> megacore-shardable on v7x.
            dimension_semantics=("parallel",),
            vmem_limit_bytes=vmem_limit),
    )(x2d, w_p, b_p)

    # Tiny (DOUT_P x B) slab -> (B, output_dim) logits.
    return out_t[:output_dim, :].T


class LogisticRegression:
    """Pallas-TPU port of HPFL's LogisticRegression: x.view(-1, 784) @ W + b."""

    def __init__(self, weight, bias, *, tile_b=None):
        # weight: (input_dim, output_dim)  (already transposed vs torch's (out, in))
        # bias:   (output_dim,)
        self.input_dim, self.output_dim = weight.shape
        # Hoisted, once-per-model param prep (review: don't redo this per call):
        # pad output dim only to a sublane multiple (10 -> 16), cast W to bf16.
        self.dout_p = max(8, _round_up(self.output_dim, 8))
        w_p = jnp.zeros((self.input_dim, self.dout_p), jnp.bfloat16)
        self.w_p = w_p.at[:, :self.output_dim].set(weight.astype(jnp.bfloat16))
        b_p = jnp.zeros((self.dout_p, 1), jnp.float32)
        self.b_p = b_p.at[:self.output_dim, 0].set(bias.astype(jnp.float32))
        self.tile_b = int(tile_b) if tile_b is not None else _default_tile_b()

    def __call__(self, x):
        return _forward(x, self.w_p, self.b_p, self.output_dim, self.tile_b)


def init_params(key, input_dim=784, output_dim=10, dtype=jnp.float32):
    # nn.Linear default init: U(-1/sqrt(fan_in), +1/sqrt(fan_in)).
    kw, kb = jax.random.split(key)
    bound = 1.0 / jnp.sqrt(jnp.asarray(input_dim, dtype))
    weight = jax.random.uniform(kw, (input_dim, output_dim), dtype,
                                minval=-bound, maxval=bound)
    bias = jax.random.uniform(kb, (output_dim,), dtype,
                              minval=-bound, maxval=bound)
    return weight, bias


if __name__ == "__main__":
    key = jax.random.PRNGKey(0)
    k_x, k_x2, k_p = jax.random.split(key, 3)

    input_dim, output_dim = 28 * 28, 10
    weight, bias = init_params(k_p, input_dim=input_dim, output_dim=output_dim)
    model = LogisticRegression(weight, bias)

    # --- Small MNIST-like batch: (B, 1, 28, 28) -> view(-1, 784) -> Linear ---
    B = 4
    x = jax.random.normal(k_x, (B, 1, 28, 28), dtype=jnp.float32)
    out = jax.block_until_ready(model(x))
    assert out.shape == (B, output_dim), out.shape

    # Reference with the same bf16 rounding of x/W, f32 accumulate.
    w_bf32 = weight.astype(jnp.bfloat16).astype(jnp.float32)
    x_bf32 = x.reshape(-1, input_dim).astype(jnp.bfloat16).astype(jnp.float32)
    ref_bf = x_bf32 @ w_bf32 + bias
    assert jnp.allclose(out, ref_bf, atol=1e-3, rtol=1e-3), "mismatch vs bf16 reference"

    # Loose check against the pure-f32 reference (bf16 quantization error only).
    ref_f32 = x.reshape(-1, input_dim) @ weight + bias
    assert jnp.allclose(out, ref_f32, atol=5e-2, rtol=5e-2), "mismatch vs f32 reference"

    # --- Ragged batch, not a multiple of 8 (exercises the no-pad partial path) ---
    B2 = 13
    x2 = jax.random.normal(k_x2, (B2, 1, 28, 28), dtype=jnp.float32)
    out2 = jax.block_until_ready(model(x2))
    assert out2.shape == (B2, output_dim), out2.shape
    ref2 = (x2.reshape(-1, input_dim).astype(jnp.bfloat16).astype(jnp.float32)
            @ w_bf32 + bias)
    assert jnp.allclose(out2, ref2, atol=1e-3, rtol=1e-3), "ragged-batch mismatch"

    print("KERNEL_OK")
</pallas_src>

<mosaic_0001>
module attributes {stable_mosaic.version = 11 : i64} {
  func.func @linear_kernel(%arg0: i32, %arg1: memref<4x784xf32, #tpu.memory_space<vmem>>, %arg2: memref<784x16xbf16, #tpu.memory_space<vmem>>, %arg3: memref<16x1xf32, #tpu.memory_space<vmem>>, %arg4: memref<16x4xf32, #tpu.memory_space<vmem>>) attributes {dimension_semantics = [#tpu.dimension_semantics<parallel>], iteration_bounds = array<i64: 1>, scalar_prefetch = 0 : i64, scratch_operands = 0 : i64, tpu.core_type = #tpu.core_type<tc>, window_params = [{transform_indices = @transform_0, window_bounds = array<i64: 4, 784>}, {pipeline_mode = #tpu.pipeline_mode<synchronous>, transform_indices = @transform_1, window_bounds = array<i64: 784, 16>}, {pipeline_mode = #tpu.pipeline_mode<synchronous>, transform_indices = @transform_2, window_bounds = array<i64: 16, 1>}, {transform_indices = @transform_3, window_bounds = array<i64: 16, 4>}]} {
    %c0 = arith.constant 0 : index
    %c0_0 = arith.constant 0 : index
    %0 = vector.load %arg1[%c0, %c0_0] : memref<4x784xf32, #tpu.memory_space<vmem>>, vector<4x784xf32>
    %1 = arith.truncf %0 : vector<4x784xf32> to vector<4x784xbf16>
    %c0_1 = arith.constant 0 : index
    %c0_2 = arith.constant 0 : index
    %2 = vector.load %arg2[%c0_1, %c0_2] : memref<784x16xbf16, #tpu.memory_space<vmem>>, vector<784x16xbf16>
    %cst = arith.constant dense<0.000000e+00> : vector<16x4xf32>
    %3 = tpu.matmul %2, %1, %cst {dimension_numbers = #tpu.dot_dimension_numbers<[0], [1], [1], [0], [0, 1, 1, 0], [], []>} : vector<784x16xbf16>, vector<4x784xbf16>, vector<16x4xf32> -> vector<16x4xf32>
    %c0_3 = arith.constant 0 : index
    %c0_4 = arith.constant 0 : index
    %4 = vector.load %arg3[%c0_3, %c0_4] : memref<16x1xf32, #tpu.memory_space<vmem>>, vector<16x1xf32>
    %5 = vector.broadcast %4 : vector<16x1xf32> to vector<16x4xf32>
    %6 = arith.addf %3, %5 : vector<16x4xf32>
    %c0_5 = arith.constant 0 : index
    %c0_6 = arith.constant 0 : index
    %7 = vector.load %arg4[%c0_5, %c0_6] : memref<16x4xf32, #tpu.memory_space<vmem>>, vector<16x4xf32>
    tpu.vector_store %arg4[%c0_5, %c0_6], %6 {strides = array<i32>} : memref<16x4xf32, #tpu.memory_space<vmem>>, vector<16x4xf32>,
    return
  }
  func.func @transform_0(%arg0: i32) -> (i32, i32) {
    %c0_i32 = arith.constant 0 : i32
    %c0_i32_0 = arith.constant 0 : i32
    return %arg0, %c0_i32 : i32, i32
  }
  func.func @transform_1(%arg0: i32) -> (i32, i32) {
    %c0_i32 = arith.constant 0 : i32
    %c0_i32_0 = arith.constant 0 : i32
    %c0_i32_1 = arith.constant 0 : i32
    return %c0_i32, %c0_i32_0 : i32, i32
  }
  func.func @transform_2(%arg0: i32) -> (i32, i32) {
    %c0_i32 = arith.constant 0 : i32
    %c0_i32_0 = arith.constant 0 : i32
    %c0_i32_1 = arith.constant 0 : i32
    return %c0_i32, %c0_i32_0 : i32, i32
  }
  func.func @transform_3(%arg0: i32) -> (i32, i32) {
    %c0_i32 = arith.constant 0 : i32
    %c0_i32_0 = arith.constant 0 : i32
    return %c0_i32, %arg0 : i32, i32
  }
}

</mosaic_0001>

<llo_original>
// kernel: tpu_custom_call.1
$region0: #{tpu_custom_call.1}
  #allocation0 [shape = 'u32[]', space=smem, size = 0x4, offset = 0x4, fixed_abs, tag = 'smem constant byte address 0x4 - core index']
  #allocation1 [shape = 'u32[72,128]{1,0:T(1,128)}', space=vmem, size = 0x9000, scoped, tag = 'internal scratch']
  %s0 = inlined_call_operand.vmem [shape: f32[4,784], index: 0, kind: input, shape index: {}]
  %s1 = inlined_call_operand.vmem [shape: bf16[784,16], index: 1, kind: input, shape index: {}]
  %s2 = inlined_call_operand.vmem [shape: f32[16,1], index: 2, kind: input, shape index: {}]
  %s3 = inlined_call_operand.vmem [shape: f32[16,4], index: 3, kind: output, shape index: {}]
  %s4 = sld [smem:[#allocation0]]
  $region22: #{tpu_custom_call.1} parent=0
    _
  %s6 = ssub.s32 1, %s4
  %s7 = scalar_select 0, %s6, %s4
  // Predicated region
  $region2: #{tpu_custom_call.1} parent=0 // pred_check
    _
  $region3: #{tpu_custom_call.1} parent=0 // pred_check_branch
    %9 = sbr.rel (0) target = $region5
  $region4: #{tpu_custom_call.1} parent=0 // pred_region
    _
  $region5: #{tpu_custom_call.1} parent=0 // pred_fallthru
    _
  // Predicated region
  $region6: #{tpu_custom_call.1} parent=0 // pred_check
    _
  $region7: #{tpu_custom_call.1} parent=0 // pred_check_branch
    %11 = sbr.rel (0) target = $region9
  $region8: #{tpu_custom_call.1} parent=0 // pred_region
    _
  $region9: #{tpu_custom_call.1} parent=0 // pred_fallthru
    _
  // Predicated region
  $region10: #{tpu_custom_call.1} parent=0 // pred_check
    _
  $region11: #{tpu_custom_call.1} parent=0 // pred_check_branch
    %13 = sbr.rel (0) target = $region13
  $region12: #{tpu_custom_call.1} parent=0 // pred_region
    _
  $region13: #{tpu_custom_call.1} parent=0 // pred_fallthru
    _
  %v15 = vld [vmem:[%s0] sm:$0xff]
  %v16 = vld [vmem:[%s0 + $0x8] sm:$0xff]
  %v17 = vld [vmem:[%s0 + $0x10] sm:$0xff]
  %v18 = vld [vmem:[%s0 + $0x18] sm:$0xf]
  %23 = vst [vmem:[#allocation1] ss:$2 sm:$0xff] %v15
  %s24 = scalar_lea.vmem [#allocation1], 16
  %25 = vst [vmem:[%s24] ss:$2 sm:$0xff] %v16
  %s26 = scalar_lea.vmem [#allocation1], 32
  %27 = vst [vmem:[%s26] ss:$2 sm:$0xff] %v17
  %s28 = scalar_lea.vmem [#allocation1], 48
  %29 = vst [vmem:[%s28] ss:$2 sm:$0xff] %v18
  %v30 = vld.sshfl [vmem:[#allocation1] sm:$0xff pattern:$0x75316420]
  %v31 = vld.sshfl [vmem:[#allocation1 + $0x8] sm:$0xff pattern:$0x75316420]
  %v32 = vld.sshfl [vmem:[#allocation1 + $0x10] sm:$0xff pattern:$0x75316420]
  %v33 = vld.sshfl [vmem:[#allocation1 + $0x18] sm:$0xff pattern:$0x75316420]
  %v34 = vld.sshfl [vmem:[#allocation1 + $0x20] sm:$0xff pattern:$0x75316420]
  %v35 = vld.sshfl [vmem:[#allocation1 + $0x28] sm:$0xff pattern:$0x75316420]
  %v36 = vld.sshfl [vmem:[#allocation1 + $0x30] sm:$0xff pattern:$0x75316420]
  %v44 = vpack.c.bf16 %v30, %v30
  %v45 = vpack.c.bf16 %v31, %v31
  %v46 = vpack.c.bf16 %v32, %v32
  %v47 = vpack.c.bf16 %v33, %v33
  %v48 = vpack.c.bf16 %v34, %v34
  %v49 = vpack.c.bf16 %v35, %v35
  %v50 = vpack.c.bf16 %v36, %v36
  %v51 = vld [vmem:[%s1] sm:$0xf]
  %v52 = vld [vmem:[%s1 + $0x4] sm:$0xf]
  %v53 = vld [vmem:[%s1 + $0x8] sm:$0xf]
  %v54 = vld [vmem:[%s1 + $0xc] sm:$0xf]
  %v55 = vld [vmem:[%s1 + $0x10] sm:$0xf]
  %v56 = vld [vmem:[%s1 + $0x14] sm:$0xf]
  %v57 = vld [vmem:[%s1 + $0x18] sm:$0xf]
  %v58 = vld [vmem:[%s1 + $0x1c] sm:$0xf]
  %v59 = vld [vmem:[%s1 + $0x20] sm:$0xf]
  %v60 = vld [vmem:[%s1 + $0x24] sm:$0xf]
  %v61 = vld [vmem:[%s1 + $0x28] sm:$0xf]
  %v62 = vld [vmem:[%s1 + $0x2c] sm:$0xf]
  %v63 = vld [vmem:[%s1 + $0x30] sm:$0xf]
  %v64 = vld [vmem:[%s1 + $0x34] sm:$0xf]
  %v65 = vld [vmem:[%s1 + $0x38] sm:$0xf]
  %v66 = vld [vmem:[%s1 + $0x3c] sm:$0xf]
  %v67 = vld [vmem:[%s1 + $0x40] sm:$0xf]
  %v68 = vld [vmem:[%s1 + $0x44] sm:$0xf]
  %v69 = vld [vmem:[%s1 + $0x48] sm:$0xf]
  %v70 = vld [vmem:[%s1 + $0x4c] sm:$0xf]
  %v71 = vld [vmem:[%s1 + $0x50] sm:$0xf]
  %v72 = vld [vmem:[%s1 + $0x54] sm:$0xf]
  %v73 = vld [vmem:[%s1 + $0x58] sm:$0xf]
  %v74 = vld [vmem:[%s1 + $0x5c] sm:$0xf]
  %v75 = vld [vmem:[%s1 + $0x60] sm:$0xf]
  %v76 = vld [vmem:[%s1 + $0x64] sm:$0xf]
  %v77 = vld [vmem:[%s1 + $0x68] sm:$0xf]
  %v78 = vld [vmem:[%s1 + $0x6c] sm:$0xf]
  %v79 = vld [vmem:[%s1 + $0x70] sm:$0xf]
  %v80 = vld [vmem:[%s1 + $0x74] sm:$0xf]
  %v81 = vld [vmem:[%s1 + $0x78] sm:$0xf]
  %v82 = vld [vmem:[%s1 + $0x7c] sm:$0xf]
  %v83 = vld [vmem:[%s1 + $0x80] sm:$0xf]
  %v84 = vld [vmem:[%s1 + $0x84] sm:$0xf]
  %v85 = vld [vmem:[%s1 + $0x88] sm:$0xf]
  %v86 = vld [vmem:[%s1 + $0x8c] sm:$0xf]
  %v87 = vld [vmem:[%s1 + $0x90] sm:$0xf]
  %v88 = vld [vmem:[%s1 + $0x94] sm:$0xf]
  %v89 = vld [vmem:[%s1 + $0x98] sm:$0xf]
  %v90 = vld [vmem:[%s1 + $0x9c] sm:$0xf]
  %v91 = vld [vmem:[%s1 + $0xa0] sm:$0xf]
  %v92 = vld [vmem:[%s1 + $0xa4] sm:$0xf]
  %v93 = vld [vmem:[%s1 + $0xa8] sm:$0xf]
  %v94 = vld [vmem:[%s1 + $0xac] sm:$0xf]
  %v95 = vld [vmem:[%s1 + $0xb0] sm:$0xf]
  %v96 = vld [vmem:[%s1 + $0xb4] sm:$0xf]
  %v97 = vld [vmem:[%s1 + $0xb8] sm:$0xf]
  %v98 = vld [vmem:[%s1 + $0xbc] sm:$0xf]
  %v99 = vld [vmem:[%s1 + $0xc0] sm:$0xf]
  %v100 = vld [vmem:[%s1 + $0xc4] sm:$0xf]
  %v101 = vld [vmem:[%s1 + $0xc8] sm:$0xf]
  %v102 = vld [vmem:[%s1 + $0xcc] sm:$0xf]
  %v103 = vld [vmem:[%s1 + $0xd0] sm:$0xf]
  %v104 = vld [vmem:[%s1 + $0xd4] sm:$0xf]
  %v105 = vld [vmem:[%s1 + $0xd8] sm:$0xf]
  %v106 = vld [vmem:[%s1 + $0xdc] sm:$0xf]
  %v107 = vld [vmem:[%s1 + $0xe0] sm:$0xf]
  %v108 = vld [vmem:[%s1 + $0xe4] sm:$0xf]
  %v109 = vld [vmem:[%s1 + $0xe8] sm:$0xf]
  %v110 = vld [vmem:[%s1 + $0xec] sm:$0xf]
  %v111 = vld [vmem:[%s1 + $0xf0] sm:$0xf]
  %v112 = vld [vmem:[%s1 + $0xf4] sm:$0xf]
  %v113 = vld [vmem:[%s1 + $0xf8] sm:$0xf]
  %v114 = vld [vmem:[%s1 + $0xfc] sm:$0xf]
  %v115 = vld [vmem:[%s1 + $0x100] sm:$0xf]
  %v116 = vld [vmem:[%s1 + $0x104] sm:$0xf]
  %v117 = vld [vmem:[%s1 + $0x108] sm:$0xf]
  %v118 = vld [vmem:[%s1 + $0x10c] sm:$0xf]
  %v119 = vld [vmem:[%s1 + $0x110] sm:$0xf]
  %v120 = vld [vmem:[%s1 + $0x114] sm:$0xf]
  %v121 = vld [vmem:[%s1 + $0x118] sm:$0xf]
  %v122 = vld [vmem:[%s1 + $0x11c] sm:$0xf]
  %v123 = vld [vmem:[%s1 + $0x120] sm:$0xf]
  %v124 = vld [vmem:[%s1 + $0x124] sm:$0xf]
  %v125 = vld [vmem:[%s1 + $0x128] sm:$0xf]
  %v126 = vld [vmem:[%s1 + $0x12c] sm:$0xf]
  %v127 = vld [vmem:[%s1 + $0x130] sm:$0xf]
  %v128 = vld [vmem:[%s1 + $0x134] sm:$0xf]
  %v129 = vld [vmem:[%s1 + $0x138] sm:$0xf]
  %v130 = vld [vmem:[%s1 + $0x13c] sm:$0xf]
  %v131 = vld [vmem:[%s1 + $0x140] sm:$0xf]
  %v132 = vld [vmem:[%s1 + $0x144] sm:$0xf]
  %v133 = vld [vmem:[%s1 + $0x148] sm:$0xf]
  %v134 = vld [vmem:[%s1 + $0x14c] sm:$0xf]
  %v135 = vld [vmem:[%s1 + $0x150] sm:$0xf]
  %v136 = vld [vmem:[%s1 + $0x154] sm:$0xf]
  %v137 = vld [vmem:[%s1 + $0x158] sm:$0xf]
  %v138 = vld [vmem:[%s1 + $0x15c] sm:$0xf]
  %v139 = vld [vmem:[%s1 + $0x160] sm:$0xf]
  %v140 = vld [vmem:[%s1 + $0x164] sm:$0xf]
  %v141 = vld [vmem:[%s1 + $0x168] sm:$0xf]
  %v142 = vld [vmem:[%s1 + $0x16c] sm:$0xf]
  %v143 = vld [vmem:[%s1 + $0x170] sm:$0xf]
  %v144 = vld [vmem:[%s1 + $0x174] sm:$0xf]
  %v145 = vld [vmem:[%s1 + $0x178] sm:$0xf]
  %v146 = vld [vmem:[%s1 + $0x17c] sm:$0xf]
  %v147 = vld [vmem:[%s1 + $0x180] sm:$0xf]
  %v148 = vld [vmem:[%s1 + $0x184] sm:$0xf]
  %v149 = vld [vmem:[%s2] sm:$0xff]
  %v150 = vld [vmem:[%s2 + $0x8] sm:$0xff]
  %152 = vset.pattern.permute.xlu0 0
  %153 = vperm.xlu0 %152, %v149
  %v154 = vpop.permute.xlu0 %153
  %157 = vset.pattern.permute.xlu0 0
  %158 = vperm.xlu0 %157, %v150
  %v159 = vpop.permute.xlu0 %158
  %v259 = vunpack.c.l.b16 %v51
  %v260 = vunpack.c.l.b16 %v52
  %v261 = vunpack.c.l.b16 %v53
  %v262 = vunpack.c.l.b16 %v54
  %v263 = vunpack.c.l.b16 %v55
  %v264 = vunpack.c.l.b16 %v56
  %v265 = vunpack.c.l.b16 %v57
  %v266 = vunpack.c.l.b16 %v58
  %v267 = vunpack.c.l.b16 %v59
  %v268 = vunpack.c.l.b16 %v60
  %v269 = vunpack.c.l.b16 %v61
  %v270 = vunpack.c.l.b16 %v62
  %v271 = vunpack.c.l.b16 %v63
  %v272 = vunpack.c.l.b16 %v64
  %v273 = vunpack.c.l.b16 %v65
  %v274 = vunpack.c.l.b16 %v66
  %v275 = vunpack.c.l.b16 %v67
  %v276 = vunpack.c.l.b16 %v68
  %v277 = vunpack.c.l.b16 %v69
  %v278 = vunpack.c.l.b16 %v70
  %v279 = vunpack.c.l.b16 %v71
  %v280 = vunpack.c.l.b16 %v72
  %v281 = vunpack.c.l.b16 %v73
  %v282 = vunpack.c.l.b16 %v74
  %v283 = vunpack.c.l.b16 %v75
  %v284 = vunpack.c.l.b16 %v76
  %v285 = vunpack.c.l.b16 %v77
  %v286 = vunpack.c.l.b16 %v78
  %v287 = vunpack.c.l.b16 %v79
  %v288 = vunpack.c.l.b16 %v80
  %v289 = vunpack.c.l.b16 %v81
  %v290 = vunpack.c.l.b16 %v82
  %v291 = vunpack.c.l.b16 %v83
  %v292 = vunpack.c.l.b16 %v84
  %v293 = vunpack.c.l.b16 %v85
  %v294 = vunpack.c.l.b16 %v86
  %v295 = vunpack.c.l.b16 %v87
  %v296 = vunpack.c.l.b16 %v88
  %v297 = vunpack.c.l.b16 %v89
  %v298 = vunpack.c.l.b16 %v90
  %v299 = vunpack.c.l.b16 %v91
  %v300 = vunpack.c.l.b16 %v92
  %v301 = vunpack.c.l.b16 %v93
  %v302 = vunpack.c.l.b16 %v94
  %v303 = vunpack.c.l.b16 %v95
  %v304 = vunpack.c.l.b16 %v96
  %v305 = vunpack.c.l.b16 %v97
  %v306 = vunpack.c.l.b16 %v98
  %v307 = vunpack.c.l.b16 %v99
  %v308 = vunpack.c.l.b16 %v100
  %v309 = vunpack.c.l.b16 %v101
  %v310 = vunpack.c.l.b16 %v102
  %v311 = vunpack.c.l.b16 %v103
  %v312 = vunpack.c.l.b16 %v104
  %v313 = vunpack.c.l.b16 %v105
  %v314 = vunpack.c.l.b16 %v106
  %v315 = vunpack.c.l.b16 %v107
  %v316 = vunpack.c.l.b16 %v108
  %v317 = vunpack.c.l.b16 %v109
  %v318 = vunpack.c.l.b16 %v110
  %v319 = vunpack.c.l.b16 %v111
  %v320 = vunpack.c.l.b16 %v112
  %v321 = vunpack.c.l.b16 %v113
  %v322 = vunpack.c.l.b16 %v114
  %v323 = vunpack.c.l.b16 %v115
  %v324 = vunpack.c.l.b16 %v116
  %v325 = vunpack.c.l.b16 %v117
  %v326 = vunpack.c.l.b16 %v118
  %v327 = vunpack.c.l.b16 %v119
  %v328 = vunpack.c.l.b16 %v120
  %v329 = vunpack.c.l.b16 %v121
  %v330 = vunpack.c.l.b16 %v122
  %v331 = vunpack.c.l.b16 %v123
  %v332 = vunpack.c.l.b16 %v124
  %v333 = vunpack.c.l.b16 %v125
  %v334 = vunpack.c.l.b16 %v126
  %v335 = vunpack.c.l.b16 %v127
  %v336 = vunpack.c.l.b16 %v128
  %v337 = vunpack.c.l.b16 %v129
  %v338 = vunpack.c.l.b16 %v130
  %v339 = vunpack.c.l.b16 %v131
  %v340 = vunpack.c.l.b16 %v132
  %v341 = vunpack.c.l.b16 %v133
  %v342 = vunpack.c.l.b16 %v134
  %v343 = vunpack.c.l.b16 %v135
  %v344 = vunpack.c.l.b16 %v136
  %v345 = vunpack.c.l.b16 %v137
  %v346 = vunpack.c.l.b16 %v138
  %v347 = vunpack.c.l.b16 %v139
  %v348 = vunpack.c.l.b16 %v140
  %v349 = vunpack.c.l.b16 %v141
  %v350 = vunpack.c.l.b16 %v142
  %v351 = vunpack.c.l.b16 %v143
  %v352 = vunpack.c.l.b16 %v144
  %v353 = vunpack.c.l.b16 %v145
  %v354 = vunpack.c.l.b16 %v146
  %v355 = vunpack.c.l.b16 %v147
  %v356 = vunpack.c.l.b16 %v148
  %v357 = vpack.c.b16 %v260, %v259
  %v358 = vpack.c.b16 %v262, %v261
  %v359 = vpack.c.b16 %v264, %v263
  %v360 = vpack.c.b16 %v266, %v265
  %v361 = vpack.c.b16 %v268, %v267
  %v362 = vpack.c.b16 %v270, %v269
  %v363 = vpack.c.b16 %v272, %v271
  %v364 = vpack.c.b16 %v274, %v273
  %v365 = vpack.c.b16 %v276, %v275
  %v366 = vpack.c.b16 %v278, %v277
  %v367 = vpack.c.b16 %v280, %v279
  %v368 = vpack.c.b16 %v282, %v281
  %v369 = vpack.c.b16 %v284, %v283
  %v370 = vpack.c.b16 %v286, %v285
  %v371 = vpack.c.b16 %v288, %v287
  %v372 = vpack.c.b16 %v290, %v289
  %v373 = vpack.c.b16 %v292, %v291
  %v374 = vpack.c.b16 %v294, %v293
  %v375 = vpack.c.b16 %v296, %v295
  %v376 = vpack.c.b16 %v298, %v297
  %v377 = vpack.c.b16 %v300, %v299
  %v378 = vpack.c.b16 %v302, %v301
  %v379 = vpack.c.b16 %v304, %v303
  %v380 = vpack.c.b16 %v306, %v305
  %v381 = vpack.c.b16 %v308, %v307
  %v382 = vpack.c.b16 %v310, %v309
  %v383 = vpack.c.b16 %v312, %v311
  %v384 = vpack.c.b16 %v314, %v313
  %v385 = vpack.c.b16 %v316, %v315
  %v386 = vpack.c.b16 %v318, %v317
  %v387 = vpack.c.b16 %v320, %v319
  %v388 = vpack.c.b16 %v322, %v321
  %v389 = vpack.c.b16 %v324, %v323
  %v390 = vpack.c.b16 %v326, %v325
  %v391 = vpack.c.b16 %v328, %v327
  %v392 = vpack.c.b16 %v330, %v329
  %v393 = vpack.c.b16 %v332, %v331
  %v394 = vpack.c.b16 %v334, %v333
  %v395 = vpack.c.b16 %v336, %v335
  %v396 = vpack.c.b16 %v338, %v337
  %v397 = vpack.c.b16 %v340, %v339
  %v398 = vpack.c.b16 %v342, %v341
  %v399 = vpack.c.b16 %v344, %v343
  %v400 = vpack.c.b16 %v346, %v345
  %v401 = vpack.c.b16 %v348, %v347
  %v402 = vpack.c.b16 %v350, %v349
  %v403 = vpack.c.b16 %v352, %v351
  %v404 = vpack.c.b16 %v354, %v353
  %v405 = vpack.c.b16 %v356, %v355
  %455 = vxpose.xlu0.c.b16.start [1/8] %v357, 128
  %456 = vxpose.xlu0.c.b16.cont [2/8] %v358, 128
  %457 = vxpose.xlu0.c.b16.cont [3/8] %v359, 128
  %458 = vxpose.xlu0.c.b16.cont [4/8] %v360, 128
  %459 = vxpose.xlu0.c.b16.cont [5/8] %v361, 128
  %460 = vxpose.xlu0.c.b16.cont [6/8] %v362, 128
  %461 = vxpose.xlu0.c.b16.cont [7/8] %v363, 128
  %462 = vxpose.xlu0.c.b16.end [8/8] %v364, 128
  %v463 = vpop.trf.xlu0
  %v464 = vpop.trf.xlu0
  %v465 = vpop.trf.xlu0
  %v466 = vpop.trf.xlu0
  %v467 = vpop.trf.xlu0
  %v468 = vpop.trf.xlu0
  %v469 = vpop.trf.xlu0
  %v470 = vpop.trf.xlu0
  %471 = vxpose.xlu0.c.b16.start [1/8] %v365, 128
  %472 = vxpose.xlu0.c.b16.cont [2/8] %v366, 128
  %473 = vxpose.xlu0.c.b16.cont [3/8] %v367, 128
  %474 = vxpose.xlu0.c.b16.cont [4/8] %v368, 128
  %475 = vxpose.xlu0.c.b16.cont [5/8] %v369, 128
  %476 = vxpose.xlu0.c.b16.cont [6/8] %v370, 128
  %477 = vxpose.xlu0.c.b16.cont [7/8] %v371, 128
  %478 = vxpose.xlu0.c.b16.end [8/8] %v372, 128
  %v479 = vpop.trf.xlu0
  %v480 = vpop.trf.xlu0
  %v481 = vpop.trf.xlu0
  %v482 = vpop.trf.xlu0
  %v483 = vpop.trf.xlu0
  %v484 = vpop.trf.xlu0
  %v485 = vpop.trf.xlu0
  %v486 = vpop.trf.xlu0
  %487 = vxpose.xlu0.c.b16.start [1/8] %v373, 128
  %488 = vxpose.xlu0.c.b16.cont [2/8] %v374, 128
  %489 = vxpose.xlu0.c.b16.cont [3/8] %v375, 128
  %490 = vxpose.xlu0.c.b16.cont [4/8] %v376, 128
  %491 = vxpose.xlu0.c.b16.cont [5/8] %v377, 128
  %492 = vxpose.xlu0.c.b16.cont [6/8] %v378, 128
  %493 = vxpose.xlu0.c.b16.cont [7/8] %v379, 128
  %494 = vxpose.xlu0.c.b16.end [8/8] %v380, 128
  %v495 = vpop.trf.xlu0
  %v496 = vpop.trf.xlu0
  %v497 = vpop.trf.xlu0
  %v498 = vpop.trf.xlu0
  %v499 = vpop.trf.xlu0
  %v500 = vpop.trf.xlu0
  %v501 = vpop.trf.xlu0
  %v502 = vpop.trf.xlu0
  %503 = vxpose.xlu0.c.b16.start [1/8] %v381, 128
  %504 = vxpose.xlu0.c.b16.cont [2/8] %v382, 128
  %505 = vxpose.xlu0.c.b16.cont [3/8] %v383, 128
  %506 = vxpose.xlu0.c.b16.cont [4/8] %v384, 128
  %507 = vxpose.xlu0.c.b16.cont [5/8] %v385, 128
  %508 = vxpose.xlu0.c.b16.cont [6/8] %v386, 128
  %509 = vxpose.xlu0.c.b16.cont [7/8] %v387, 128
  %510 = vxpose.xlu0.c.b16.end [8/8] %v388, 128
  %v511 = vpop.trf.xlu0
  %v512 = vpop.trf.xlu0
  %v513 = vpop.trf.xlu0
  %v514 = vpop.trf.xlu0
  %v515 = vpop.trf.xlu0
  %v516 = vpop.trf.xlu0
  %v517 = vpop.trf.xlu0
  %v518 = vpop.trf.xlu0
  %519 = vxpose.xlu0.c.b16.start [1/8] %v389, 128
  %520 = vxpose.xlu0.c.b16.cont [2/8] %v390, 128
  %521 = vxpose.xlu0.c.b16.cont [3/8] %v391, 128
  %522 = vxpose.xlu0.c.b16.cont [4/8] %v392, 128
  %523 = vxpose.xlu0.c.b16.cont [5/8] %v393, 128
  %524 = vxpose.xlu0.c.b16.cont [6/8] %v394, 128
  %525 = vxpose.xlu0.c.b16.cont [7/8] %v395, 128
  %526 = vxpose.xlu0.c.b16.end [8/8] %v396, 128
  %v527 = vpop.trf.xlu0
  %v528 = vpop.trf.xlu0
  %v529 = vpop.trf.xlu0
  %v530 = vpop.trf.xlu0
  %v531 = vpop.trf.xlu0
  %v532 = vpop.trf.xlu0
  %v533 = vpop.trf.xlu0
  %v534 = vpop.trf.xlu0
  %535 = vxpose.xlu0.c.b16.start [1/8] %v397, 128
  %536 = vxpose.xlu0.c.b16.cont [2/8] %v398, 128
  %537 = vxpose.xlu0.c.b16.cont [3/8] %v399, 128
  %538 = vxpose.xlu0.c.b16.cont [4/8] %v400, 128
  %539 = vxpose.xlu0.c.b16.cont [5/8] %v401, 128
  %540 = vxpose.xlu0.c.b16.cont [6/8] %v402, 128
  %541 = vxpose.xlu0.c.b16.cont [7/8] %v403, 128
  %542 = vxpose.xlu0.c.b16.end [8/8] %v404, 128
  %v543 = vpop.trf.xlu0
  %v544 = vpop.trf.xlu0
  %v545 = vpop.trf.xlu0
  %v546 = vpop.trf.xlu0
  %v547 = vpop.trf.xlu0
  %v548 = vpop.trf.xlu0
  %v549 = vpop.trf.xlu0
  %v550 = vpop.trf.xlu0
  %551 = vxpose.xlu0.c.b16.start [1/8] %v405, 128
  %552 = vxpose.xlu0.c.b16.cont [2/8] 0, 128
  %553 = vxpose.xlu0.c.b16.cont [3/8] 0, 128
  %554 = vxpose.xlu0.c.b16.cont [4/8] 0, 128
  %555 = vxpose.xlu0.c.b16.cont [5/8] 0, 128
  %556 = vxpose.xlu0.c.b16.cont [6/8] 0, 128
  %557 = vxpose.xlu0.c.b16.cont [7/8] 0, 128
  %558 = vxpose.xlu0.c.b16.end [8/8] 0, 128
  %v559 = vpop.trf.xlu0
  %v560 = vpop.trf.xlu0
  %v561 = vpop.trf.xlu0
  %v562 = vpop.trf.xlu0
  %v563 = vpop.trf.xlu0
  %v564 = vpop.trf.xlu0
  %v565 = vpop.trf.xlu0
  %v566 = vpop.trf.xlu0
  %vm567 = vcmask 130048
  %v569 = vsel %vm567, %v559, 0
  %v572 = vsel %vm567, %v50, 0
  %574 = vmatpush.bf16.xpose.msra.mxu0 0
  %575 = vmatpush.bf16.xpose.msra.mxu0 0
  %576 = vmatpush.bf16.xpose.msra.mxu0 0
  %577 = vmatpush.bf16.xpose.msra.mxu0 0
  %578 = vmatpush.bf16.xpose.msra.mxu0 0
  %579 = vmatpush.bf16.xpose.msra.mxu0 0
  %580 = vmatpush.bf16.xpose.msra.mxu0 0
  %581 = vmatpush.bf16.xpose.msra.mxu0 %v44
  %582 = vmatmul.bf16.gmra.mxu0 %v463
  %v583 = vpop.f32.mrf.mxu0
  %v584 = vadd.f32 %v154, %v583
  %v585 = vpop.f32.mrf.mxu0
  %v586 = vadd.f32 %v159, %v585
  %587 = vdwg.mxu0
  %588 = vmatpush.bf16.xpose.msra.mxu0 0
  %589 = vmatpush.bf16.xpose.msra.mxu0 0
  %590 = vmatpush.bf16.xpose.msra.mxu0 0
  %591 = vmatpush.bf16.xpose.msra.mxu0 0
  %592 = vmatpush.bf16.xpose.msra.mxu0 0
  %593 = vmatpush.bf16.xpose.msra.mxu0 0
  %594 = vmatpush.bf16.xpose.msra.mxu0 0
  %595 = vmatpush.bf16.xpose.msra.mxu0 %v45
  %596 = vmatmul.bf16.gmra.mxu0 %v479
  %v597 = vpop.f32.mrf.mxu0
  %v598 = vadd.f32 %v584, %v597
  %v599 = vpop.f32.mrf.mxu0
  %v600 = vadd.f32 %v586, %v599
  %601 = vdwg.mxu0
  %602 = vmatpush.bf16.xpose.msra.mxu0 0
  %603 = vmatpush.bf16.xpose.msra.mxu0 0
  %604 = vmatpush.bf16.xpose.msra.mxu0 0
  %605 = vmatpush.bf16.xpose.msra.mxu0 0
  %606 = vmatpush.bf16.xpose.msra.mxu0 0
  %607 = vmatpush.bf16.xpose.msra.mxu0 0
  %608 = vmatpush.bf16.xpose.msra.mxu0 0
  %609 = vmatpush.bf16.xpose.msra.mxu0 %v46
  %610 = vmatmul.bf16.gmra.mxu0 %v495
  %v611 = vpop.f32.mrf.mxu0
  %v612 = vadd.f32 %v598, %v611
  %v613 = vpop.f32.mrf.mxu0
  %v614 = vadd.f32 %v600, %v613
  %615 = vdwg.mxu0
  %616 = vmatpush.bf16.xpose.msra.mxu0 0
  %617 = vmatpush.bf16.xpose.msra.mxu0 0
  %618 = vmatpush.bf16.xpose.msra.mxu0 0
  %619 = vmatpush.bf16.xpose.msra.mxu0 0
  %620 = vmatpush.bf16.xpose.msra.mxu0 0
  %621 = vmatpush.bf16.xpose.msra.mxu0 0
  %622 = vmatpush.bf16.xpose.msra.mxu0 0
  %623 = vmatpush.bf16.xpose.msra.mxu0 %v47
  %624 = vmatmul.bf16.gmra.mxu0 %v511
  %v625 = vpop.f32.mrf.mxu0
  %v626 = vadd.f32 %v612, %v625
  %v627 = vpop.f32.mrf.mxu0
  %v628 = vadd.f32 %v614, %v627
  %629 = vdwg.mxu0
  %630 = vmatpush.bf16.xpose.msra.mxu0 0
  %631 = vmatpush.bf16.xpose.msra.mxu0 0
  %632 = vmatpush.bf16.xpose.msra.mxu0 0
  %633 = vmatpush.bf16.xpose.msra.mxu0 0
  %634 = vmatpush.bf16.xpose.msra.mxu0 0
  %635 = vmatpush.bf16.xpose.msra.mxu0 0
  %636 = vmatpush.bf16.xpose.msra.mxu0 0
  %637 = vmatpush.bf16.xpose.msra.mxu0 %v48
  %638 = vmatmul.bf16.gmra.mxu0 %v527
  %v639 = vpop.f32.mrf.mxu0
  %v640 = vadd.f32 %v626, %v639
  %v641 = vpop.f32.mrf.mxu0
  %v642 = vadd.f32 %v628, %v641
  %643 = vdwg.mxu0
  %644 = vmatpush.bf16.xpose.msra.mxu0 0
  %645 = vmatpush.bf16.xpose.msra.mxu0 0
  %646 = vmatpush.bf16.xpose.msra.mxu0 0
  %647 = vmatpush.bf16.xpose.msra.mxu0 0
  %648 = vmatpush.bf16.xpose.msra.mxu0 0
  %649 = vmatpush.bf16.xpose.msra.mxu0 0
  %650 = vmatpush.bf16.xpose.msra.mxu0 0
  %651 = vmatpush.bf16.xpose.msra.mxu0 %v49
  %652 = vmatmul.bf16.gmra.mxu0 %v543
  %v653 = vpop.f32.mrf.mxu0
  %v654 = vadd.f32 %v640, %v653
  %v655 = vpop.f32.mrf.mxu0
  %v656 = vadd.f32 %v642, %v655
  %657 = vdwg.mxu0
  %658 = vmatpush.bf16.xpose.msra.mxu0 0
  %659 = vmatpush.bf16.xpose.msra.mxu0 0
  %660 = vmatpush.bf16.xpose.msra.mxu0 0
  %661 = vmatpush.bf16.xpose.msra.mxu0 0
  %662 = vmatpush.bf16.xpose.msra.mxu0 0
  %663 = vmatpush.bf16.xpose.msra.mxu0 0
  %664 = vmatpush.bf16.xpose.msra.mxu0 0
  %665 = vmatpush.bf16.xpose.msra.mxu0 %v572
  %666 = vmatmul.bf16.gmra.mxu0 %v569
  %v667 = vpop.f32.mrf.mxu0
  %v668 = vadd.f32 %v654, %v667
  %v669 = vpop.f32.mrf.mxu0
  %v670 = vadd.f32 %v656, %v669
  %671 = vdwg.mxu0
  %vm672 = vcmask 31744
  %673 = vst.msk [vmem:[%s3] sm:$0xff] %vm672, %v668
  %674 = vst.msk [vmem:[%s3 + $0x8] sm:$0xff] %vm672, %v670
  // Predicated region
  $region14: #{tpu_custom_call.1} parent=0 // pred_check
    _
  $region15: #{tpu_custom_call.1} parent=0 // pred_check_branch
    %676 = sbr.rel (0) target = $region17
  $region16: #{tpu_custom_call.1} parent=0 // pred_region
    _
  $region17: #{tpu_custom_call.1} parent=0 // pred_fallthru
    _
  // Predicated region
  $region18: #{tpu_custom_call.1} parent=0 // pred_check
    _
  $region19: #{tpu_custom_call.1} parent=0 // pred_check_branch
    %678 = sbr.rel (0) target = $region21
  $region20: #{tpu_custom_call.1} parent=0 // pred_region
    _
  $region21: #{tpu_custom_call.1} parent=0 // pred_fallthru
    _

</llo_original>
